<compile_context>
chip_gen: v7x
topology: tpu7x:2x2x1
jax: 0.10.0
libtpu: 0.0.40
codegen_flags: <defaults>
</compile_context>

<pallas_src>
import jax
import jax.numpy as jnp
from jax.experimental import pallas as pl
from jax.experimental.pallas import tpu as pltpu

ANCHOR_DIM = 2
CDIM = 4
IN_DIM = ANCHOR_DIM + CDIM   # 6
IN_PAD = 8                   # packed feature rows (sublane-aligned)
ZDIM = 10
HDIM = 128

TB_MAX = 256                 # batch lanes per grid step (multiple of 128)


def _round_up(x, m):
    return (x + m - 1) // m * m


def _encoder_kernel(x_ref, w1_ref, b1_ref, wh_ref, bh_ref, out_ref):
    # Feature-major: batch is the lane (last) dim throughout.
    # Stage 1: hidden = tanh(W1 @ x + b1)                       -> (HDIM, tb)
    h = jnp.tanh(
        jnp.dot(w1_ref[...], x_ref[...], preferred_element_type=jnp.float32)
        + b1_ref[...]
    )

    # Stage 2: fused heads.  Rows [ZDIM:] of wh/bh were pre-scaled by 0.5 at
    # pack time, so a SINGLE tanh serves both heads:
    #   loc   = tanh(u)
    #   scale = sigmoid(u) + 0.001 = 0.5 * tanh(u/2) + 0.501
    y = jnp.dot(wh_ref[...], h, preferred_element_type=jnp.float32) + bh_ref[...]
    t = jnp.tanh(y)                                              # (2*ZDIM, tb)
    row = jax.lax.broadcasted_iota(jnp.int32, y.shape, dimension=0)
    out_ref[...] = jnp.where(row < ZDIM, t, 0.5 * t + 0.501)


def _encoder_forward(anchor, c_embedding, params):
    """Returns (z_loc, z_scale) — the Normal distribution's parameters."""
    w1, b1, wl, bl, ws, bs = params
    B = anchor.shape[0]

    # ---- trace-time weight packing (tiny ~14 KB tensors, done once) --------
    w1_fm = jnp.pad(w1, ((0, IN_PAD - IN_DIM), (0, 0))).T        # (HDIM, 8)
    b1_fm = b1.T                                                 # (HDIM, 1)
    wh_fm = jnp.concatenate([wl, 0.5 * ws], axis=1).T            # (2*ZDIM, HDIM)
    bh_fm = jnp.concatenate([bl, 0.5 * bs], axis=1).T            # (2*ZDIM, 1)

    # ---- batch tiling: batch is the lane dim, so tb is a multiple of 128 ---
    tb = min(TB_MAX, _round_up(max(B, 1), 128))
    b_pad = _round_up(max(B, 1), tb)
    grid = (b_pad // tb,)

    # ---- one lane-dense feature-major input stream (8, b_pad) --------------
    x = jnp.concatenate([anchor, c_embedding], axis=1)           # (B, 6)
    x = jnp.pad(x, ((0, b_pad - B), (0, IN_PAD - IN_DIM)))       # (b_pad, 8)
    x_fm = x.T                                                   # (8, b_pad)

    def const_spec(shape):
        # Constant block index -> DMA'd once, stays VMEM-resident across steps.
        return pl.BlockSpec(shape, lambda i: (0, 0))

    out_fm = pl.pallas_call(
        _encoder_kernel,
        out_shape=jax.ShapeDtypeStruct((2 * ZDIM, b_pad), jnp.float32),
        grid=grid,
        in_specs=[
            pl.BlockSpec((IN_PAD, tb), lambda i: (0, i)),
            const_spec(w1_fm.shape),
            const_spec(b1_fm.shape),
            const_spec(wh_fm.shape),
            const_spec(bh_fm.shape),
        ],
        out_specs=pl.BlockSpec((2 * ZDIM, tb), lambda i: (0, i)),
        compiler_params=pltpu.CompilerParams(
            dimension_semantics=("parallel",),
        ),
    )(x_fm, w1_fm, b1_fm, wh_fm, bh_fm)

    # Head split is a contiguous row slice of the feature-major output; one
    # dense slice+transpose back to the module's (B, ZDIM) convention.
    z_loc = out_fm[:ZDIM, :B].T
    z_scale = out_fm[ZDIM:, :B].T
    return z_loc, z_scale


encoder_forward = jax.jit(_encoder_forward)


def init_params(key):
    """Deterministic synthetic parameters matching the module's __init__ shapes.

    Weights stored (in_features, out_features) so the math computes x @ W
    (equivalent to PyTorch's x @ W^T with (out, in) storage); biases are
    (1, out_features).
    """
    k1, k2, k3, k4, k5, k6 = jax.random.split(key, 6)
    w1 = jax.random.normal(k1, (IN_DIM, HDIM), jnp.float32) * 0.1    # Linear(6, 128)
    b1 = jax.random.normal(k2, (1, HDIM), jnp.float32) * 0.01
    wl = jax.random.normal(k3, (HDIM, ZDIM), jnp.float32) * 0.1      # z_loc Linear(128, 10)
    bl = jax.random.normal(k4, (1, ZDIM), jnp.float32) * 0.01
    ws = jax.random.normal(k5, (HDIM, ZDIM), jnp.float32) * 0.1      # z_log_scale Linear(128, 10)
    bs = jax.random.normal(k6, (1, ZDIM), jnp.float32) * 0.01
    return (w1, b1, wl, bl, ws, bs)


def encoder_reference(anchor, c_embedding, params):
    """Pure-JAX reference matching the PyTorch module exactly."""
    w1, b1, wl, bl, ws, bs = params
    x = jnp.concatenate([anchor, c_embedding], axis=1)
    h = jnp.tanh(x @ w1 + b1)
    loc = jnp.tanh(h @ wl + bl)
    scale = jax.nn.sigmoid(h @ ws + bs) + 0.001
    return loc, scale


if __name__ == "__main__":
    key = jax.random.PRNGKey(0)
    kp, ka, kc = jax.random.split(key, 3)

    B = 16  # small batch (module default is 128; kept small per spec)
    params = init_params(kp)
    anchor = jax.random.normal(ka, (B, ANCHOR_DIM), jnp.float32)
    c_embedding = jax.random.normal(kc, (B, CDIM), jnp.float32)

    z_loc, z_scale = encoder_forward(anchor, c_embedding, params)
    jax.block_until_ready((z_loc, z_scale))

    ref_loc, ref_scale = encoder_reference(anchor, c_embedding, params)
    assert z_loc.shape == (B, ZDIM) and z_scale.shape == (B, ZDIM)
    assert jnp.allclose(z_loc, ref_loc, atol=1e-5), "z_loc mismatch"
    assert jnp.allclose(z_scale, ref_scale, atol=1e-5), "z_scale mismatch"
    assert bool(jnp.all(z_scale > 0.0)), "scale must be positive"

    print("KERNEL_OK")
</pallas_src>

<mosaic_0001>
module attributes {stable_mosaic.version = 11 : i64} {
  func.func @_encoder_kernel(%arg0: i32, %arg1: memref<8x128xf32, #tpu.memory_space<vmem>>, %arg2: memref<128x8xf32, #tpu.memory_space<vmem>>, %arg3: memref<128x1xf32, #tpu.memory_space<vmem>>, %arg4: memref<20x128xf32, #tpu.memory_space<vmem>>, %arg5: memref<20x1xf32, #tpu.memory_space<vmem>>, %arg6: memref<20x128xf32, #tpu.memory_space<vmem>>) attributes {dimension_semantics = [#tpu.dimension_semantics<parallel>], iteration_bounds = array<i64: 1>, scalar_prefetch = 0 : i64, scratch_operands = 0 : i64, tpu.core_type = #tpu.core_type<tc>, window_params = [{transform_indices = @transform_0, window_bounds = array<i64: 8, 128>}, {pipeline_mode = #tpu.pipeline_mode<synchronous>, transform_indices = @transform_1, window_bounds = array<i64: 128, 8>}, {pipeline_mode = #tpu.pipeline_mode<synchronous>, transform_indices = @transform_2, window_bounds = array<i64: 128, 1>}, {pipeline_mode = #tpu.pipeline_mode<synchronous>, transform_indices = @transform_3, window_bounds = array<i64: 20, 128>}, {pipeline_mode = #tpu.pipeline_mode<synchronous>, transform_indices = @transform_4, window_bounds = array<i64: 20, 1>}, {transform_indices = @transform_5, window_bounds = array<i64: 20, 128>}]} {
    %c0 = arith.constant 0 : index
    %c0_0 = arith.constant 0 : index
    %0 = vector.load %arg2[%c0, %c0_0] : memref<128x8xf32, #tpu.memory_space<vmem>>, vector<128x8xf32>
    %c0_1 = arith.constant 0 : index
    %c0_2 = arith.constant 0 : index
    %1 = vector.load %arg1[%c0_1, %c0_2] : memref<8x128xf32, #tpu.memory_space<vmem>>, vector<8x128xf32>
    %cst = arith.constant dense<0.000000e+00> : vector<128x128xf32>
    %2 = tpu.matmul %0, %1, %cst {dimension_numbers = #tpu.dot_dimension_numbers<[1], [0], [0], [1], [0, 0, 1, 1], [], []>} : vector<128x8xf32>, vector<8x128xf32>, vector<128x128xf32> -> vector<128x128xf32>
    %c0_3 = arith.constant 0 : index
    %c0_4 = arith.constant 0 : index
    %3 = vector.load %arg3[%c0_3, %c0_4] : memref<128x1xf32, #tpu.memory_space<vmem>>, vector<128x1xf32>
    %4 = vector.broadcast %3 : vector<128x1xf32> to vector<128x128xf32>
    %5 = arith.addf %2, %4 : vector<128x128xf32>
    %6 = math.tanh %5 : vector<128x128xf32>
    %c0_5 = arith.constant 0 : index
    %c0_6 = arith.constant 0 : index
    %7 = vector.load %arg4[%c0_5, %c0_6] : memref<20x128xf32, #tpu.memory_space<vmem>>, vector<20x128xf32>
    %cst_7 = arith.constant dense<0.000000e+00> : vector<20x128xf32>
    %8 = tpu.matmul %7, %6, %cst_7 {dimension_numbers = #tpu.dot_dimension_numbers<[1], [0], [0], [1], [0, 0, 1, 1], [], []>} : vector<20x128xf32>, vector<128x128xf32>, vector<20x128xf32> -> vector<20x128xf32>
    %c0_8 = arith.constant 0 : index
    %c0_9 = arith.constant 0 : index
    %9 = vector.load %arg5[%c0_8, %c0_9] : memref<20x1xf32, #tpu.memory_space<vmem>>, vector<20x1xf32>
    %10 = vector.broadcast %9 : vector<20x1xf32> to vector<20x128xf32>
    %11 = arith.addf %8, %10 : vector<20x128xf32>
    %12 = math.tanh %11 : vector<20x128xf32>
    %13 = tpu.iota {dimensions = array<i32: 0>} : vector<20x128xi32>
    %c10_i32 = arith.constant 10 : i32
    %14 = vector.broadcast %c10_i32 : i32 to vector<20x128xi32>
    %15 = arith.cmpi slt, %13, %14 : vector<20x128xi32>
    %cst_10 = arith.constant 5.000000e-01 : f32
    %16 = vector.broadcast %cst_10 : f32 to vector<20x128xf32>
    %17 = arith.mulf %16, %12 : vector<20x128xf32>
    %cst_11 = arith.constant 5.010000e-01 : f32
    %18 = vector.broadcast %cst_11 : f32 to vector<20x128xf32>
    %19 = arith.addf %17, %18 : vector<20x128xf32>
    %20 = arith.select %15, %12, %19 : vector<20x128xi1>, vector<20x128xf32>
    %c0_12 = arith.constant 0 : index
    %c0_13 = arith.constant 0 : index
    %21 = vector.load %arg6[%c0_12, %c0_13] : memref<20x128xf32, #tpu.memory_space<vmem>>, vector<20x128xf32>
    tpu.vector_store %arg6[%c0_12, %c0_13], %20 {strides = array<i32>} : memref<20x128xf32, #tpu.memory_space<vmem>>, vector<20x128xf32>,
    return
  }
  func.func @transform_0(%arg0: i32) -> (i32, i32) {
    %c0_i32 = arith.constant 0 : i32
    %c0_i32_0 = arith.constant 0 : i32
    return %c0_i32, %arg0 : i32, i32
  }
  func.func @transform_1(%arg0: i32) -> (i32, i32) {
    %c0_i32 = arith.constant 0 : i32
    %c0_i32_0 = arith.constant 0 : i32
    %c0_i32_1 = arith.constant 0 : i32
    return %c0_i32, %c0_i32_0 : i32, i32
  }
  func.func @transform_2(%arg0: i32) -> (i32, i32) {
    %c0_i32 = arith.constant 0 : i32
    %c0_i32_0 = arith.constant 0 : i32
    %c0_i32_1 = arith.constant 0 : i32
    return %c0_i32, %c0_i32_0 : i32, i32
  }
  func.func @transform_3(%arg0: i32) -> (i32, i32) {
    %c0_i32 = arith.constant 0 : i32
    %c0_i32_0 = arith.constant 0 : i32
    %c0_i32_1 = arith.constant 0 : i32
    return %c0_i32, %c0_i32_0 : i32, i32
  }
  func.func @transform_4(%arg0: i32) -> (i32, i32) {
    %c0_i32 = arith.constant 0 : i32
    %c0_i32_0 = arith.constant 0 : i32
    %c0_i32_1 = arith.constant 0 : i32
    return %c0_i32, %c0_i32_0 : i32, i32
  }
  func.func @transform_5(%arg0: i32) -> (i32, i32) {
    %c0_i32 = arith.constant 0 : i32
    %c0_i32_0 = arith.constant 0 : i32
    return %c0_i32, %arg0 : i32, i32
  }
}

</mosaic_0001>

<llo_original>
// kernel: _encoder_forward.1
$region0: #{_encoder_forward.1}
  #allocation0 [shape = 'u32[]', space=smem, size = 0x4, offset = 0x4, fixed_abs, tag = 'smem constant byte address 0x4 - core index']
  #allocation1 [shape = 'u32[144,128]{1,0:T(1,128)}', space=vmem, size = 0x12000, scoped, tag = 'internal scratch']
  %s0 = inlined_call_operand.vmem [shape: f32[8,128], index: 0, kind: input, shape index: {}]
  %s1 = inlined_call_operand.vmem [shape: f32[128,8], index: 1, kind: input, shape index: {}]
  %s2 = inlined_call_operand.vmem [shape: f32[128,1], index: 2, kind: input, shape index: {}]
  %s3 = inlined_call_operand.vmem [shape: f32[20,128], index: 3, kind: input, shape index: {}]
  %s4 = inlined_call_operand.vmem [shape: f32[20,1], index: 4, kind: input, shape index: {}]
  %s5 = inlined_call_operand.vmem [shape: f32[20,128], index: 5, kind: output, shape index: {}]
  %s6 = sld [smem:[#allocation0]]
  $region30: #{_encoder_forward.1} parent=0
    _
  %s8 = ssub.s32 1, %s6
  %s9 = scalar_select 0, %s8, %s6
  // Predicated region
  $region2: #{_encoder_forward.1} parent=0 // pred_check
    _
  $region3: #{_encoder_forward.1} parent=0 // pred_check_branch
    %11 = sbr.rel (0) target = $region5
  $region4: #{_encoder_forward.1} parent=0 // pred_region
    _
  $region5: #{_encoder_forward.1} parent=0 // pred_fallthru
    _
  // Predicated region
  $region6: #{_encoder_forward.1} parent=0 // pred_check
    _
  $region7: #{_encoder_forward.1} parent=0 // pred_check_branch
    %13 = sbr.rel (0) target = $region9
  $region8: #{_encoder_forward.1} parent=0 // pred_region
    _
  $region9: #{_encoder_forward.1} parent=0 // pred_fallthru
    _
  // Predicated region
  $region10: #{_encoder_forward.1} parent=0 // pred_check
    _
  $region11: #{_encoder_forward.1} parent=0 // pred_check_branch
    %15 = sbr.rel (0) target = $region13
  $region12: #{_encoder_forward.1} parent=0 // pred_region
    _
  $region13: #{_encoder_forward.1} parent=0 // pred_fallthru
    _
  // Predicated region
  $region14: #{_encoder_forward.1} parent=0 // pred_check
    _
  $region15: #{_encoder_forward.1} parent=0 // pred_check_branch
    %17 = sbr.rel (0) target = $region17
  $region16: #{_encoder_forward.1} parent=0 // pred_region
    _
  $region17: #{_encoder_forward.1} parent=0 // pred_fallthru
    _
  // Predicated region
  $region18: #{_encoder_forward.1} parent=0 // pred_check
    _
  $region19: #{_encoder_forward.1} parent=0 // pred_check_branch
    %19 = sbr.rel (0) target = $region21
  $region20: #{_encoder_forward.1} parent=0 // pred_region
    _
  $region21: #{_encoder_forward.1} parent=0 // pred_fallthru
    _
  %v20 = vld [vmem:[%s1] sm:$0xff]
  %v21 = vld [vmem:[%s1 + $0x8] sm:$0xff]
  %v22 = vld [vmem:[%s1 + $0x10] sm:$0xff]
  %v23 = vld [vmem:[%s1 + $0x18] sm:$0xff]
  %v24 = vld [vmem:[%s1 + $0x20] sm:$0xff]
  %v25 = vld [vmem:[%s1 + $0x28] sm:$0xff]
  %v26 = vld [vmem:[%s1 + $0x30] sm:$0xff]
  %v27 = vld [vmem:[%s1 + $0x38] sm:$0xff]
  %v28 = vld [vmem:[%s1 + $0x40] sm:$0xff]
  %v29 = vld [vmem:[%s1 + $0x48] sm:$0xff]
  %v30 = vld [vmem:[%s1 + $0x50] sm:$0xff]
  %v31 = vld [vmem:[%s1 + $0x58] sm:$0xff]
  %v32 = vld [vmem:[%s1 + $0x60] sm:$0xff]
  %v33 = vld [vmem:[%s1 + $0x68] sm:$0xff]
  %v34 = vld [vmem:[%s1 + $0x70] sm:$0xff]
  %v35 = vld [vmem:[%s1 + $0x78] sm:$0xff]
  %v36 = vld [vmem:[%s0] sm:$0xff]
  %v37 = vld [vmem:[%s2] sm:$0xff]
  %v38 = vld [vmem:[%s2 + $0x8] sm:$0xff]
  %v39 = vld [vmem:[%s2 + $0x10] sm:$0xff]
  %v40 = vld [vmem:[%s2 + $0x18] sm:$0xff]
  %v41 = vld [vmem:[%s2 + $0x20] sm:$0xff]
  %v42 = vld [vmem:[%s2 + $0x28] sm:$0xff]
  %v43 = vld [vmem:[%s2 + $0x30] sm:$0xff]
  %v44 = vld [vmem:[%s2 + $0x38] sm:$0xff]
  %v45 = vld [vmem:[%s2 + $0x40] sm:$0xff]
  %v46 = vld [vmem:[%s2 + $0x48] sm:$0xff]
  %v47 = vld [vmem:[%s2 + $0x50] sm:$0xff]
  %v48 = vld [vmem:[%s2 + $0x58] sm:$0xff]
  %v49 = vld [vmem:[%s2 + $0x60] sm:$0xff]
  %v50 = vld [vmem:[%s2 + $0x68] sm:$0xff]
  %v51 = vld [vmem:[%s2 + $0x70] sm:$0xff]
  %v52 = vld [vmem:[%s2 + $0x78] sm:$0xff]
  %54 = vset.pattern.permute.xlu0 0
  %55 = vperm.xlu0 %54, %v37
  %v56 = vpop.permute.xlu0 %55
  %59 = vset.pattern.permute.xlu0 0
  %60 = vperm.xlu0 %59, %v38
  %v61 = vpop.permute.xlu0 %60
  %64 = vset.pattern.permute.xlu0 0
  %65 = vperm.xlu0 %64, %v39
  %v66 = vpop.permute.xlu0 %65
  %69 = vset.pattern.permute.xlu0 0
  %70 = vperm.xlu0 %69, %v40
  %v71 = vpop.permute.xlu0 %70
  %74 = vset.pattern.permute.xlu0 0
  %75 = vperm.xlu0 %74, %v41
  %v76 = vpop.permute.xlu0 %75
  %79 = vset.pattern.permute.xlu0 0
  %80 = vperm.xlu0 %79, %v42
  %v81 = vpop.permute.xlu0 %80
  %84 = vset.pattern.permute.xlu0 0
  %85 = vperm.xlu0 %84, %v43
  %v86 = vpop.permute.xlu0 %85
  %89 = vset.pattern.permute.xlu0 0
  %90 = vperm.xlu0 %89, %v44
  %v91 = vpop.permute.xlu0 %90
  %94 = vset.pattern.permute.xlu0 0
  %95 = vperm.xlu0 %94, %v45
  %v96 = vpop.permute.xlu0 %95
  %99 = vset.pattern.permute.xlu0 0
  %100 = vperm.xlu0 %99, %v46
  %v101 = vpop.permute.xlu0 %100
  %104 = vset.pattern.permute.xlu0 0
  %105 = vperm.xlu0 %104, %v47
  %v106 = vpop.permute.xlu0 %105
  %109 = vset.pattern.permute.xlu0 0
  %110 = vperm.xlu0 %109, %v48
  %v111 = vpop.permute.xlu0 %110
  %114 = vset.pattern.permute.xlu0 0
  %115 = vperm.xlu0 %114, %v49
  %v116 = vpop.permute.xlu0 %115
  %119 = vset.pattern.permute.xlu0 0
  %120 = vperm.xlu0 %119, %v50
  %v121 = vpop.permute.xlu0 %120
  %124 = vset.pattern.permute.xlu0 0
  %125 = vperm.xlu0 %124, %v51
  %v126 = vpop.permute.xlu0 %125
  %129 = vset.pattern.permute.xlu0 0
  %130 = vperm.xlu0 %129, %v52
  %v131 = vpop.permute.xlu0 %130
  %vm133 = vcmask 64512
  %v135 = vsel %vm133, %v20, 0
  %v138 = vsel %vm133, %v21, 0
  %v141 = vsel %vm133, %v22, 0
  %v144 = vsel %vm133, %v23, 0
  %v147 = vsel %vm133, %v24, 0
  %v150 = vsel %vm133, %v25, 0
  %v153 = vsel %vm133, %v26, 0
  %v156 = vsel %vm133, %v27, 0
  %v159 = vsel %vm133, %v28, 0
  %v162 = vsel %vm133, %v29, 0
  %v165 = vsel %vm133, %v30, 0
  %v168 = vsel %vm133, %v31, 0
  %v171 = vsel %vm133, %v32, 0
  %v174 = vsel %vm133, %v33, 0
  %v177 = vsel %vm133, %v34, 0
  %v180 = vsel %vm133, %v35, 0
  %182 = vmatprep.subr.mxu0 0.0
  %183 = vmatpush1.msra.mxu0 %v36
  %184 = vmatprep.subr.mxu0 0.0
  %185 = vmatpush1.msra.mxu0 0.0
  %186 = vmatprep.subr.mxu0 0.0
  %187 = vmatpush1.msra.mxu0 0.0
  %188 = vmatprep.subr.mxu0 0.0
  %189 = vmatpush1.msra.mxu0 0.0
  %190 = vmatprep.subr.mxu0 0.0
  %191 = vmatpush1.msra.mxu0 0.0
  %192 = vmatprep.subr.mxu0 0.0
  %193 = vmatpush1.msra.mxu0 0.0
  %194 = vmatprep.subr.mxu0 0.0
  %195 = vmatpush1.msra.mxu0 0.0
  %196 = vmatprep.subr.mxu0 0.0
  %197 = vmatpush1.msra.mxu0 0.0
  %198 = vmatprep.subr.mxu0 0.0
  %199 = vmatpush1.msra.mxu0 0.0
  %200 = vmatprep.subr.mxu0 0.0
  %201 = vmatpush1.msra.mxu0 0.0
  %202 = vmatprep.subr.mxu0 0.0
  %203 = vmatpush1.msra.mxu0 0.0
  %204 = vmatprep.subr.mxu0 0.0
  %205 = vmatpush1.msra.mxu0 0.0
  %206 = vmatprep.subr.mxu0 0.0
  %207 = vmatpush1.msra.mxu0 0.0
  %208 = vmatprep.subr.mxu0 0.0
  %209 = vmatpush1.msra.mxu0 0.0
  %210 = vmatprep.subr.mxu0 0.0
  %211 = vmatpush1.msra.mxu0 0.0
  %212 = vmatprep.subr.mxu0 0.0
  %213 = vmatpush1.msra.mxu0 0.0
  %214 = vmatprep.subr.mxu0 0.0
  %215 = vmatpush1.msra.mxu0 0.0
  %216 = vmatprep.subr.mxu0 0.0
  %217 = vmatpush1.msra.mxu0 0.0
  %218 = vmatprep.subr.mxu0 0.0
  %219 = vmatpush1.msra.mxu0 0.0
  %220 = vmatprep.subr.mxu0 0.0
  %221 = vmatpush1.msra.mxu0 0.0
  %222 = vmatprep.subr.mxu0 0.0
  %223 = vmatpush1.msra.mxu0 0.0
  %224 = vmatprep.subr.mxu0 0.0
  %225 = vmatpush1.msra.mxu0 0.0
  %226 = vmatprep.subr.mxu0 0.0
  %227 = vmatpush1.msra.mxu0 0.0
  %228 = vmatprep.subr.mxu0 0.0
  %229 = vmatpush1.msra.mxu0 0.0
  %230 = vmatprep.subr.mxu0 0.0
  %231 = vmatpush1.msra.mxu0 0.0
  %232 = vmatprep.subr.mxu0 0.0
  %233 = vmatpush1.msra.mxu0 0.0
  %234 = vmatprep.subr.mxu0 0.0
  %235 = vmatpush1.msra.mxu0 0.0
  %236 = vmatprep.subr.mxu0 0.0
  %237 = vmatpush1.msra.mxu0 0.0
  %238 = vmatprep.subr.mxu0 0.0
  %239 = vmatpush1.msra.mxu0 0.0
  %240 = vmatprep.subr.mxu0 0.0
  %241 = vmatpush1.msra.mxu0 0.0
  %242 = vmatprep.subr.mxu0 0.0
  %243 = vmatpush1.msra.mxu0 0.0
  %244 = vmatprep.subr.mxu0 0.0
  %245 = vmatpush1.msra.mxu0 0.0
  %246 = vmatprep.mubr.f32.mxu0 0.0
  %247 = vmatmul.mubr.f32.gmra.mrb[0].mxu0 %v135
  %v248 = vpop.f32.mrb[0].mxu0
  %v249 = vadd.f32 %v56, %v248
  %v250 = vpop.f32.mrb[0].mxu0
  %251 = vmatprep.mubr.f32.mxu0 0.0
  %252 = vmatmul.mubr.f32.gmra.mrb[0].mxu0 %v138
  %v253 = vpop.f32.mrb[0].mxu0
  %v254 = vadd.f32 %v61, %v253
  %v255 = vpop.f32.mrb[0].mxu0
  %256 = vmatprep.mubr.f32.mxu0 0.0
  %257 = vmatmul.mubr.f32.gmra.mrb[0].mxu0 %v141
  %v258 = vpop.f32.mrb[0].mxu0
  %v259 = vadd.f32 %v66, %v258
  %v260 = vpop.f32.mrb[0].mxu0
  %261 = vmatprep.mubr.f32.mxu0 0.0
  %262 = vmatmul.mubr.f32.gmra.mrb[0].mxu0 %v144
  %v263 = vpop.f32.mrb[0].mxu0
  %v264 = vadd.f32 %v71, %v263
  %v265 = vpop.f32.mrb[0].mxu0
  %266 = vmatprep.mubr.f32.mxu0 0.0
  %267 = vmatmul.mubr.f32.gmra.mrb[0].mxu0 %v147
  %v268 = vpop.f32.mrb[0].mxu0
  %v269 = vadd.f32 %v76, %v268
  %v270 = vpop.f32.mrb[0].mxu0
  %271 = vmatprep.mubr.f32.mxu0 0.0
  %272 = vmatmul.mubr.f32.gmra.mrb[0].mxu0 %v150
  %v273 = vpop.f32.mrb[0].mxu0
  %v274 = vadd.f32 %v81, %v273
  %v275 = vpop.f32.mrb[0].mxu0
  %276 = vmatprep.mubr.f32.mxu0 0.0
  %277 = vmatmul.mubr.f32.gmra.mrb[0].mxu0 %v153
  %v278 = vpop.f32.mrb[0].mxu0
  %v279 = vadd.f32 %v86, %v278
  %v280 = vpop.f32.mrb[0].mxu0
  %281 = vmatprep.mubr.f32.mxu0 0.0
  %282 = vmatmul.mubr.f32.gmra.mrb[0].mxu0 %v156
  %v283 = vpop.f32.mrb[0].mxu0
  %v284 = vadd.f32 %v91, %v283
  %v285 = vpop.f32.mrb[0].mxu0
  %286 = vmatprep.mubr.f32.mxu0 0.0
  %287 = vmatmul.mubr.f32.gmra.mrb[0].mxu0 %v159
  %v288 = vpop.f32.mrb[0].mxu0
  %v289 = vadd.f32 %v96, %v288
  %v290 = vpop.f32.mrb[0].mxu0
  %291 = vmatprep.mubr.f32.mxu0 0.0
  %292 = vmatmul.mubr.f32.gmra.mrb[0].mxu0 %v162
  %v293 = vpop.f32.mrb[0].mxu0
  %v294 = vadd.f32 %v101, %v293
  %v295 = vpop.f32.mrb[0].mxu0
  %296 = vmatprep.mubr.f32.mxu0 0.0
  %297 = vmatmul.mubr.f32.gmra.mrb[0].mxu0 %v165
  %v298 = vpop.f32.mrb[0].mxu0
  %v299 = vadd.f32 %v106, %v298
  %v300 = vpop.f32.mrb[0].mxu0
  %301 = vmatprep.mubr.f32.mxu0 0.0
  %302 = vmatmul.mubr.f32.gmra.mrb[0].mxu0 %v168
  %v303 = vpop.f32.mrb[0].mxu0
  %v304 = vadd.f32 %v111, %v303
  %v305 = vpop.f32.mrb[0].mxu0
  %306 = vmatprep.mubr.f32.mxu0 0.0
  %307 = vmatmul.mubr.f32.gmra.mrb[0].mxu0 %v171
  %v308 = vpop.f32.mrb[0].mxu0
  %v309 = vadd.f32 %v116, %v308
  %v310 = vpop.f32.mrb[0].mxu0
  %311 = vmatprep.mubr.f32.mxu0 0.0
  %312 = vmatmul.mubr.f32.gmra.mrb[0].mxu0 %v174
  %v313 = vpop.f32.mrb[0].mxu0
  %v314 = vadd.f32 %v121, %v313
  %v315 = vpop.f32.mrb[0].mxu0
  %316 = vmatprep.mubr.f32.mxu0 0.0
  %317 = vmatmul.mubr.f32.gmra.mrb[0].mxu0 %v177
  %v318 = vpop.f32.mrb[0].mxu0
  %v319 = vadd.f32 %v126, %v318
  %v320 = vpop.f32.mrb[0].mxu0
  %321 = vmatprep.mubr.f32.mxu0 0.0
  %322 = vmatmul.mubr.f32.gmra.mrb[0].mxu0 %v180
  %v323 = vpop.f32.mrb[0].mxu0
  %v324 = vadd.f32 %v131, %v323
  %v325 = vpop.f32.mrb[0].mxu0
  %326 = vdwg.mxu0
  %v327 = vtanh.pop %v249
  %v328 = vtanh.pop %v254
  %v329 = vtanh.pop %v259
  %v330 = vtanh.pop %v264
  %v331 = vtanh.pop %v269
  %v332 = vtanh.pop %v274
  %v333 = vtanh.pop %v279
  %v334 = vtanh.pop %v284
  %v335 = vtanh.pop %v289
  %v336 = vtanh.pop %v294
  %v337 = vtanh.pop %v299
  %v338 = vtanh.pop %v304
  %v339 = vtanh.pop %v309
  %v340 = vtanh.pop %v314
  %v341 = vtanh.pop %v319
  %v342 = vtanh.pop %v324
  %v343 = vld [vmem:[%s3] sm:$0xff]
  %v344 = vld [vmem:[%s3 + $0x8] sm:$0xff]
  %v345 = vld [vmem:[%s3 + $0x10] sm:$0xf]
  %v346 = vld [vmem:[%s4] sm:$0xff]
  %v347 = vld [vmem:[%s4 + $0x8] sm:$0xff]
  %v348 = vld [vmem:[%s4 + $0x10] sm:$0xf]
  %350 = vset.pattern.permute.xlu0 0
  %351 = vperm.xlu0 %350, %v346
  %v352 = vpop.permute.xlu0 %351
  %355 = vset.pattern.permute.xlu0 0
  %356 = vperm.xlu0 %355, %v347
  %v357 = vpop.permute.xlu0 %356
  %360 = vset.pattern.permute.xlu0 0
  %361 = vperm.xlu0 %360, %v348
  %v362 = vpop.permute.xlu0 %361
  %364 = vmatprep.subr.mxu0 0.0
  %365 = vmatpush1.msra.mxu0 %v327
  %366 = vmatprep.subr.mxu0 0.0
  %367 = vmatpush1.msra.mxu0 %v328
  %368 = vmatprep.subr.mxu0 0.0
  %369 = vmatpush1.msra.mxu0 %v329
  %370 = vmatprep.subr.mxu0 0.0
  %371 = vmatpush1.msra.mxu0 %v330
  %372 = vmatprep.subr.mxu0 0.0
  %373 = vmatpush1.msra.mxu0 %v331
  %374 = vmatprep.subr.mxu0 0.0
  %375 = vmatpush1.msra.mxu0 %v332
  %376 = vmatprep.subr.mxu0 0.0
  %377 = vmatpush1.msra.mxu0 %v333
  %378 = vmatprep.subr.mxu0 0.0
  %379 = vmatpush1.msra.mxu0 %v334
  %380 = vmatprep.subr.mxu0 0.0
  %381 = vmatpush1.msra.mxu0 %v335
  %382 = vmatprep.subr.mxu0 0.0
  %383 = vmatpush1.msra.mxu0 %v336
  %384 = vmatprep.subr.mxu0 0.0
  %385 = vmatpush1.msra.mxu0 %v337
  %386 = vmatprep.subr.mxu0 0.0
  %387 = vmatpush1.msra.mxu0 %v338
  %388 = vmatprep.subr.mxu0 0.0
  %389 = vmatpush1.msra.mxu0 %v339
  %390 = vmatprep.subr.mxu0 0.0
  %391 = vmatpush1.msra.mxu0 %v340
  %392 = vmatprep.subr.mxu0 0.0
  %393 = vmatpush1.msra.mxu0 %v341
  %394 = vmatprep.subr.mxu0 0.0
  %395 = vmatpush1.msra.mxu0 %v342
  %396 = vmatprep.subr.mxu0 0.0
  %397 = vmatpush1.msra.mxu0 0.0
  %398 = vmatprep.subr.mxu0 0.0
  %399 = vmatpush1.msra.mxu0 0.0
  %400 = vmatprep.subr.mxu0 0.0
  %401 = vmatpush1.msra.mxu0 0.0
  %402 = vmatprep.subr.mxu0 0.0
  %403 = vmatpush1.msra.mxu0 0.0
  %404 = vmatprep.subr.mxu0 0.0
  %405 = vmatpush1.msra.mxu0 0.0
  %406 = vmatprep.subr.mxu0 0.0
  %407 = vmatpush1.msra.mxu0 0.0
  %408 = vmatprep.subr.mxu0 0.0
  %409 = vmatpush1.msra.mxu0 0.0
  %410 = vmatprep.subr.mxu0 0.0
  %411 = vmatpush1.msra.mxu0 0.0
  %412 = vmatprep.subr.mxu0 0.0
  %413 = vmatpush1.msra.mxu0 0.0
  %414 = vmatprep.subr.mxu0 0.0
  %415 = vmatpush1.msra.mxu0 0.0
  %416 = vmatprep.subr.mxu0 0.0
  %417 = vmatpush1.msra.mxu0 0.0
  %418 = vmatprep.subr.mxu0 0.0
  %419 = vmatpush1.msra.mxu0 0.0
  %420 = vmatprep.subr.mxu0 0.0
  %421 = vmatpush1.msra.mxu0 0.0
  %422 = vmatprep.subr.mxu0 0.0
  %423 = vmatpush1.msra.mxu0 0.0
  %424 = vmatprep.subr.mxu0 0.0
  %425 = vmatpush1.msra.mxu0 0.0
  %426 = vmatprep.subr.mxu0 0.0
  %427 = vmatpush1.msra.mxu0 0.0
  %428 = vmatprep.mubr.f32.mxu0 0.0
  %429 = vmatmul.mubr.f32.gmra.mrb[0].mxu0 %v343
  %v430 = vpop.f32.mrb[0].mxu0
  %v431 = vadd.f32 %v352, %v430
  %v432 = vpop.f32.mrb[0].mxu0
  %433 = vmatprep.mubr.f32.mxu0 0.0
  %434 = vmatmul.mubr.f32.gmra.mrb[0].mxu0 %v344
  %v435 = vpop.f32.mrb[0].mxu0
  %v436 = vadd.f32 %v357, %v435
  %v437 = vpop.f32.mrb[0].mxu0
  %438 = vmatprep.mubr.f32.mxu0 0.0
  %439 = vmatmul.mubr.f32.gmra.mrb[0].mxu0 %v345
  %v440 = vpop.f32.mrb[0].mxu0
  %v441 = vadd.f32 %v362, %v440
  %v442 = vpop.f32.mrb[0].mxu0
  %443 = vdwg.mxu0
  %v444 = vtanh.pop %v431
  %v445 = vtanh.pop %v436
  %v446 = vtanh.pop %v441
  %v447 = vlaneseq
  %v448 = vshrl.u32 %v447, 7
  %v449 = vadd.s32 %v448, 8
  %v450 = vadd.s32 %v448, 16
  %vm451 = vcmp.lt.s32.totalorder %v448, 10
  %vm452 = vcmp.lt.s32.totalorder %v449, 10
  %vm453 = vcmp.lt.s32.totalorder %v450, 10
  %v454 = vmul.f32 %v444, 0.5
  %v455 = vmul.f32 %v445, 0.5
  %v456 = vmul.f32 %v446, 0.5
  %v457 = vadd.f32 %v454, 0.501
  %v458 = vadd.f32 %v455, 0.501
  %v459 = vadd.f32 %v456, 0.501
  %v460 = vsel %vm451, %v444, %v457
  %v461 = vsel %vm452, %v445, %v458
  %v462 = vsel %vm453, %v446, %v459
  %463 = vst [vmem:[%s5] sm:$0xff] %v460
  %464 = vst [vmem:[%s5 + $0x8] sm:$0xff] %v461
  %465 = vst [vmem:[%s5 + $0x10] sm:$0xf] %v462
  // Predicated region
  $region22: #{_encoder_forward.1} parent=0 // pred_check
    _
  $region23: #{_encoder_forward.1} parent=0 // pred_check_branch
    %467 = sbr.rel (0) target = $region25
  $region24: #{_encoder_forward.1} parent=0 // pred_region
    _
  $region25: #{_encoder_forward.1} parent=0 // pred_fallthru
    _
  // Predicated region
  $region26: #{_encoder_forward.1} parent=0 // pred_check
    _
  $region27: #{_encoder_forward.1} parent=0 // pred_check_branch
    %469 = sbr.rel (0) target = $region29
  $region28: #{_encoder_forward.1} parent=0 // pred_region
    _
  $region29: #{_encoder_forward.1} parent=0 // pred_fallthru
    _

</llo_original>
